<compile_context>
chip_gen: v7x
topology: tpu7x:2x2x1
jax: 0.10.0
libtpu: 0.0.40
codegen_flags: <defaults>
</compile_context>

<pallas_src>
import functools
import math

import jax
import jax.numpy as jnp
from jax.experimental import pallas as pl
from jax.experimental.pallas import tpu as pltpu

_SPLIT_THRESHOLD_BYTES = 1 << 20   # above this per-tensor size, force a multi-step grid
_TINY_QUERY_LEN = 8                # decode fast path: rotate tiny q in plain JAX


def _cdiv(a, b):
    return -(-a // b)


# ----------------------------------------------------------------------------
# Hardware-generation parameters
# ----------------------------------------------------------------------------
@functools.lru_cache(maxsize=1)
def _hw_params():
    """(target block bytes, vmem_limit_bytes) tuned per TPU generation.

    v5e / v6e: 128 MiB physical VMEM  -> 2 MiB blocks, 64 MiB scoped limit.
    v7x:        64 MiB per TensorCore -> 1 MiB blocks, 32 MiB scoped limit.
    Unknown: conservative settings that are safe on every generation.
    """
    vmem_phys = 0
    try:
        info = pltpu.get_tpu_info()
        vmem_phys = int(getattr(info, "vmem_capacity_bytes", 0) or 0)
    except Exception:
        pass
    if vmem_phys >= (96 << 20):
        return 2 << 20, 64 << 20
    return 1 << 20, 32 << 20


# ----------------------------------------------------------------------------
# Kernels
# ----------------------------------------------------------------------------
def _rope_math(t, cos, ssin, is_lo, *, half, block_lanes):
    # Lane l within a block is (seq position)*head_dim + j; whole head_dim
    # segments per block (LB % head_dim == 0).
    #   rotate_half(t)[l] = -t[l + half]  for j <  half
    #                     = +t[l - half]  for j >= half
    # Static shifts -> cheap XLU lane rotations; sign folded into ssin; the
    # j<half selection comes from a precomputed mask row so wrapped/padded
    # lanes are discarded by the select (NaN-safe for ragged blocks).
    rot_lo = pltpu.roll(t, block_lanes - half, axis=1)   # t[(l + half) mod LB]
    rot_hi = pltpu.roll(t, half, axis=1)                 # t[(l - half) mod LB]
    rot = jnp.where(is_lo, rot_lo, rot_hi)
    return t * cos + rot * ssin


def _rope_single_kernel(tbl_ref, t_ref, o_ref, *, half, block_lanes):
    cos, ssin = tbl_ref[0:1, :], tbl_ref[1:2, :]
    is_lo = jnp.broadcast_to(tbl_ref[2:3, :], t_ref.shape) != 0.0
    t = t_ref[...].astype(jnp.float32)
    o_ref[...] = _rope_math(t, cos, ssin, is_lo, half=half,
                            block_lanes=block_lanes).astype(o_ref.dtype)


def _rope_pair_kernel(tbl_ref, q_ref, k_ref, qo_ref, ko_ref, *, half, block_lanes):
    cos, ssin = tbl_ref[0:1, :], tbl_ref[1:2, :]
    is_lo = jnp.broadcast_to(tbl_ref[2:3, :], q_ref.shape) != 0.0
    q = q_ref[...].astype(jnp.float32)
    qo_ref[...] = _rope_math(q, cos, ssin, is_lo, half=half,
                             block_lanes=block_lanes).astype(qo_ref.dtype)
    k = k_ref[...].astype(jnp.float32)
    ko_ref[...] = _rope_math(k, cos, ssin, is_lo, half=half,
                             block_lanes=block_lanes).astype(ko_ref.dtype)


# ----------------------------------------------------------------------------
# Table construction (cached; matches get_rotary_embeddings)
# ----------------------------------------------------------------------------
@functools.lru_cache(maxsize=64)
def _rope_tables(seq_len, head_dim, rope_theta, offset=0):
    """(sin, cos) of shape (seq_len, head_dim) for positions [offset, offset+seq_len)."""
    inv_freq = 1.0 / (rope_theta ** (jnp.arange(0, head_dim, 2, dtype=jnp.float32) / head_dim))
    pos = jnp.arange(offset, offset + seq_len, dtype=jnp.float32)
    freqs = pos[:, None] * inv_freq[None, :]
    angles = jnp.concatenate([freqs, freqs], axis=-1)          # (T, D)
    return jnp.sin(angles), jnp.cos(angles)


@functools.lru_cache(maxsize=64)
def _packed_tables(seq_len, head_dim, rope_theta, offset=0):
    """One stacked (3, seq_len*head_dim) f32 table: [cos, sign-folded sin, j<half mask]."""
    sin, cos = _rope_tables(seq_len, head_dim, rope_theta, offset)
    half = head_dim // 2
    first_half = jnp.arange(head_dim) < half                   # (D,)
    ssin = jnp.where(first_half, -sin, sin)                    # sign folded in
    mask = jnp.broadcast_to(first_half.astype(jnp.float32)[None, :], sin.shape)
    length = seq_len * head_dim
    return jnp.stack([cos.reshape(length), ssin.reshape(length),
                      mask.reshape(length)], axis=0).astype(jnp.float32)


# ----------------------------------------------------------------------------
# Block-size selection (dtype- and VMEM-aware, pipeline/megacore friendly)
# ----------------------------------------------------------------------------
def _choose_block(G, L, head_dim, itemsize, target_bytes):
    """Pick (GB, LB) for the flattened (G, L = seq*head_dim) view.

    Invariants: LB % head_dim == 0 (rotation segments never straddle a block),
    LB is a multiple of 128 whenever LB < L (lane-dense stores), and GB is a
    multiple of the dtype sublane granularity whenever GB < G.  Ragged tails
    are allowed (cdiv grid); the in-kernel select keeps padded-lane garbage
    out of valid outputs.
    """
    sub = {1: 32, 2: 16}.get(itemsize, 8)                        # dtype-aware sublanes
    lane_unit = head_dim * (128 // math.gcd(head_dim, 128))      # lcm(head_dim, 128)

    # Lane block.
    if L <= lane_unit:
        LB = L
    else:
        units = _cdiv(L, lane_unit)
        want_units = max(1, target_bytes // (sub * lane_unit * itemsize))
        LB = min(units, want_units) * lane_unit
        if LB >= L:
            LB = L
    # Row block.
    if G <= sub:
        GB = G
    else:
        want_rows = max(sub, (target_bytes // max(LB * itemsize, 1)) // sub * sub)
        GB = min(want_rows, _cdiv(G, sub) * sub)
        if GB >= G:
            GB = G

    # Guarantee enough grid steps for pipeline overlap + megacore sharding.
    gb_min = GB if G <= sub else min(GB, sub)
    lb_min = LB if L <= lane_unit else min(LB, lane_unit)
    steps = lambda gb, lb: _cdiv(G, gb) * _cdiv(L, lb)
    if G * L * itemsize >= _SPLIT_THRESHOLD_BYTES:
        want_steps = min(4, steps(gb_min, lb_min))
    else:
        want_steps = 1
    while steps(GB, LB) < want_steps and (GB > gb_min or LB > lb_min):
        if GB > gb_min:                       # shrink rows first: stores stay lane-dense
            new = max(gb_min, ((GB // 2) // sub) * sub)
            GB = new if new < GB else gb_min
        else:
            new = max(lb_min, ((LB // 2) // lane_unit) * lane_unit)
            LB = new if new < LB else lb_min

    assert LB % head_dim == 0, "rotation segments must not straddle lane blocks"
    return GB, LB


def _specs_and_grid(G, L, head_dim, itemsize, target_bytes):
    GB, LB = _choose_block(G, L, head_dim, itemsize, target_bytes)
    # Lane chunks outer, row chunks inner: the table block index only depends
    # on the outer axis, so Pallas keeps it resident across the inner loop.
    grid = (_cdiv(L, LB), _cdiv(G, GB))
    tbl_spec = pl.BlockSpec((3, LB), lambda c, g: (0, c))
    blk_spec = pl.BlockSpec((GB, LB), lambda c, g: (g, c))
    return grid, tbl_spec, blk_spec, LB


# ----------------------------------------------------------------------------
# pallas_call wrappers
# ----------------------------------------------------------------------------
def _rope_apply_pair(q2, k2, tbl, half, head_dim, donate):
    G, L = q2.shape
    target_bytes, vmem_limit = _hw_params()
    grid, tbl_spec, blk_spec, LB = _specs_and_grid(G, L, head_dim,
                                                   q2.dtype.itemsize, target_bytes)
    return pl.pallas_call(
        functools.partial(_rope_pair_kernel, half=half, block_lanes=LB),
        out_shape=(jax.ShapeDtypeStruct((G, L), q2.dtype),
                   jax.ShapeDtypeStruct((G, L), k2.dtype)),
        grid_spec=pltpu.PrefetchScalarGridSpec(
            num_scalar_prefetch=0,
            grid=grid,
            in_specs=[tbl_spec, blk_spec, blk_spec],
            out_specs=(blk_spec, blk_spec)),
        compiler_params=pltpu.CompilerParams(
            dimension_semantics=("parallel", "parallel"),
            vmem_limit_bytes=vmem_limit),
        input_output_aliases={1: 0, 2: 1} if donate else {},
    )(tbl, q2, k2)


def _rope_apply_one(t2, tbl, half, head_dim, donate):
    G, L = t2.shape
    target_bytes, vmem_limit = _hw_params()
    grid, tbl_spec, blk_spec, LB = _specs_and_grid(G, L, head_dim,
                                                   t2.dtype.itemsize, target_bytes)
    return pl.pallas_call(
        functools.partial(_rope_single_kernel, half=half, block_lanes=LB),
        out_shape=jax.ShapeDtypeStruct((G, L), t2.dtype),
        grid_spec=pltpu.PrefetchScalarGridSpec(
            num_scalar_prefetch=0,
            grid=grid,
            in_specs=[tbl_spec, blk_spec],
            out_specs=blk_spec),
        compiler_params=pltpu.CompilerParams(
            dimension_semantics=("parallel", "parallel"),
            vmem_limit_bytes=vmem_limit),
        input_output_aliases={1: 0} if donate else {},
    )(tbl, t2)


# ----------------------------------------------------------------------------
# Public forward (mirrors RoPE.forward(q, k))
# ----------------------------------------------------------------------------
def rope_forward(q, k, rope_theta=10000.0, *, donate_inputs=False):
    """Returns (q_rot, k_rot) with the original dtypes.

    donate_inputs=True aliases q->q_rot and k->k_rot inside the Pallas call;
    only enable it when the caller no longer needs the un-rotated tensors.
    """
    Bq, Hq, Tq, D = q.shape
    Bk, Hk, Tk, Dk = k.shape
    assert D == Dk and D % 2 == 0, "head_dim must match and be even"
    half = D // 2
    theta = float(rope_theta)
    Gq, Gk = Bq * Hq, Bk * Hk

    q2 = q.reshape(Gq, Tq * D)                  # free (contiguous) reshapes
    k2 = k.reshape(Gk, Tk * D)

    if Tq == Tk and Gq == Gk and q.dtype == k.dtype:
        # Prefill: one fused launch; the table block stays resident across q/k.
        q2r, k2r = _rope_apply_pair(q2, k2, _packed_tables(Tk, D, theta, 0),
                                    half, D, donate_inputs)
        return q2r.reshape(Bq, Hq, Tq, D), k2r.reshape(Bk, Hk, Tk, D)

    # Decode / GQA-style: k always goes through the kernel.
    k2r = _rope_apply_one(k2, _packed_tables(Tk, D, theta, 0), half, D, donate_inputs)
    k_rot = k2r.reshape(Bk, Hk, Tk, D)

    if Tq <= _TINY_QUERY_LEN:
        # Tiny decode query: launch overhead would dominate; rotate in plain JAX.
        sin, cos = _rope_tables(Tq, D, theta, Tk - Tq)
        qf = q.astype(jnp.float32)
        rot = jnp.concatenate([-qf[..., half:], qf[..., :half]], axis=-1)
        q_rot = (qf * cos[None, None] + rot * sin[None, None]).astype(q.dtype)
        return q_rot, k_rot

    q2r = _rope_apply_one(q2, _packed_tables(Tq, D, theta, Tk - Tq),
                          half, D, donate_inputs)
    return q2r.reshape(Bq, Hq, Tq, D), k_rot


# ----------------------------------------------------------------------------
# Pure-JAX reference (replicates the PyTorch module semantics)
# ----------------------------------------------------------------------------
def _rope_reference(q, k, rope_theta=10000.0):
    qf, kf = q.astype(jnp.float32), k.astype(jnp.float32)
    Tq, Tk = qf.shape[-2], kf.shape[-2]
    D = qf.shape[-1]
    sin, cos = _rope_tables(Tk, D, float(rope_theta), 0)
    sin, cos = sin[None, None], cos[None, None]

    def rotate_half(x):
        h = x.shape[-1] // 2
        return jnp.concatenate([-x[..., h:], x[..., :h]], axis=-1)

    def apply(s, c, t):
        return t * c + rotate_half(t) * s

    q_out = apply(sin[:, :, Tk - Tq:Tk], cos[:, :, Tk - Tq:Tk], qf)
    k_out = apply(sin, cos, kf)
    return q_out.astype(q.dtype), k_out.astype(k.dtype)


if __name__ == "__main__":
    key = jax.random.PRNGKey(0)
    keys = jax.random.split(key, 6)

    # 1) Config-implied small shape: d_model=128, n_heads=4 -> head_dim=32; seq_len=8.
    B, H, T, D = 2, 4, 8, 32
    q = jax.random.normal(keys[0], (B, H, T, D), dtype=jnp.float32)
    k = jax.random.normal(keys[1], (B, H, T, D), dtype=jnp.float32)
    q_rot, k_rot = rope_forward(q, k)
    jax.block_until_ready((q_rot, k_rot))
    q_ref, k_ref = _rope_reference(q, k)
    assert q_rot.shape == q.shape and k_rot.shape == k.shape
    assert jnp.allclose(q_rot, q_ref, atol=1e-5, rtol=1e-5)
    assert jnp.allclose(k_rot, k_ref, atol=1e-5, rtol=1e-5)

    # 2) Decode-style (Tq < Tk): tiny-q JAX fast path + single-tensor kernel for k.
    q_s = jax.random.normal(keys[2], (B, H, 1, D), dtype=jnp.float32)
    q_rot2, k_rot2 = rope_forward(q_s, k)
    jax.block_until_ready((q_rot2, k_rot2))
    q_ref2, k_ref2 = _rope_reference(q_s, k)
    assert jnp.allclose(q_rot2, q_ref2, atol=1e-5, rtol=1e-5)
    assert jnp.allclose(k_rot2, k_ref2, atol=1e-5, rtol=1e-5)

    # 3) bf16 prefill with a multi-block grid (dtype-aware sublanes) + donated inputs.
    Bb, Hb, Tb, Db = 4, 8, 1024, 64
    qb = jax.random.normal(keys[3], (Bb, Hb, Tb, Db), dtype=jnp.bfloat16)
    kb = jax.random.normal(keys[4], (Bb, Hb, Tb, Db), dtype=jnp.bfloat16)
    qb_ref, kb_ref = _rope_reference(qb, kb)          # compute BEFORE donating inputs
    qb_rot, kb_rot = rope_forward(qb, kb, donate_inputs=True)
    jax.block_until_ready((qb_rot, kb_rot))
    assert jnp.allclose(qb_rot.astype(jnp.float32), qb_ref.astype(jnp.float32),
                        atol=3e-2, rtol=3e-2)
    assert jnp.allclose(kb_rot.astype(jnp.float32), kb_ref.astype(jnp.float32),
                        atol=3e-2, rtol=3e-2)

    # 4) Ragged row and lane blocks (G=4 rows, L not a multiple of LB): masked tails.
    Br, Hr, Tr, Dr = 1, 4, 3000, 32
    qr = jax.random.normal(keys[5], (Br, Hr, Tr, Dr), dtype=jnp.float32)
    kr = jax.random.normal(keys[0], (Br, Hr, Tr, Dr), dtype=jnp.float32)
    qr_rot, kr_rot = rope_forward(qr, kr)
    jax.block_until_ready((qr_rot, kr_rot))
    qr_ref, kr_ref = _rope_reference(qr, kr)
    assert jnp.allclose(qr_rot, qr_ref, atol=1e-4, rtol=1e-4)
    assert jnp.allclose(kr_rot, kr_ref, atol=1e-4, rtol=1e-4)

    print("KERNEL_OK")
</pallas_src>

<mosaic_0001>
module attributes {stable_mosaic.version = 11 : i64} {
  func.func @_rope_pair_kernel(%arg0: i32, %arg1: i32, %arg2: memref<3x256xf32, #tpu.memory_space<vmem>>, %arg3: memref<8x256xf32, #tpu.memory_space<vmem>>, %arg4: memref<8x256xf32, #tpu.memory_space<vmem>>, %arg5: memref<8x256xf32, #tpu.memory_space<vmem>>, %arg6: memref<8x256xf32, #tpu.memory_space<vmem>>) attributes {dimension_semantics = [#tpu.dimension_semantics<parallel>, #tpu.dimension_semantics<parallel>], iteration_bounds = array<i64: 1, 1>, scalar_prefetch = 0 : i64, scratch_operands = 0 : i64, tpu.core_type = #tpu.core_type<tc>, window_params = [{transform_indices = @transform_0, window_bounds = array<i64: 3, 256>}, {transform_indices = @transform_1, window_bounds = array<i64: 8, 256>}, {transform_indices = @transform_2, window_bounds = array<i64: 8, 256>}, {transform_indices = @transform_3, window_bounds = array<i64: 8, 256>}, {transform_indices = @transform_4, window_bounds = array<i64: 8, 256>}]} {
    %c0 = arith.constant 0 : index
    %c0_0 = arith.constant 0 : index
    %0 = vector.load %arg2[%c0, %c0_0] : memref<3x256xf32, #tpu.memory_space<vmem>>, vector<1x256xf32>
    %c1 = arith.constant 1 : index
    %c0_1 = arith.constant 0 : index
    %1 = vector.load %arg2[%c1, %c0_1] : memref<3x256xf32, #tpu.memory_space<vmem>>, vector<1x256xf32>
    %c2 = arith.constant 2 : index
    %c0_2 = arith.constant 0 : index
    %2 = vector.load %arg2[%c2, %c0_2] : memref<3x256xf32, #tpu.memory_space<vmem>>, vector<1x256xf32>
    %3 = vector.shape_cast %2 : vector<1x256xf32> to vector<1x256xf32>
    %4 = vector.broadcast %3 : vector<1x256xf32> to vector<8x256xf32>
    %cst = arith.constant 0.000000e+00 : f32
    %5 = vector.broadcast %cst : f32 to vector<8x256xf32>
    %6 = arith.cmpf one, %4, %5 : vector<8x256xf32>
    %c0_3 = arith.constant 0 : index
    %c0_4 = arith.constant 0 : index
    %7 = vector.load %arg3[%c0_3, %c0_4] : memref<8x256xf32, #tpu.memory_space<vmem>>, vector<8x256xf32>
    %c240_i32 = arith.constant 240 : i32
    %8 = tpu.dynamic_rotate %7 by %c240_i32 dim 1 : vector<8x256xf32>, i32 -> vector<8x256xf32>
    %c16_i32 = arith.constant 16 : i32
    %9 = tpu.dynamic_rotate %7 by %c16_i32 dim 1 : vector<8x256xf32>, i32 -> vector<8x256xf32>
    %10 = arith.select %6, %8, %9 : vector<8x256xi1>, vector<8x256xf32>
    %11 = vector.broadcast %0 : vector<1x256xf32> to vector<8x256xf32>
    %12 = arith.mulf %7, %11 : vector<8x256xf32>
    %13 = vector.broadcast %1 : vector<1x256xf32> to vector<8x256xf32>
    %14 = arith.mulf %10, %13 : vector<8x256xf32>
    %15 = arith.addf %12, %14 : vector<8x256xf32>
    %c0_5 = arith.constant 0 : index
    %c0_6 = arith.constant 0 : index
    %16 = vector.load %arg5[%c0_5, %c0_6] : memref<8x256xf32, #tpu.memory_space<vmem>>, vector<8x256xf32>
    tpu.vector_store %arg5[%c0_5, %c0_6], %15 {strides = array<i32>} : memref<8x256xf32, #tpu.memory_space<vmem>>, vector<8x256xf32>,
    %c0_7 = arith.constant 0 : index
    %c0_8 = arith.constant 0 : index
    %17 = vector.load %arg4[%c0_7, %c0_8] : memref<8x256xf32, #tpu.memory_space<vmem>>, vector<8x256xf32>
    %c240_i32_9 = arith.constant 240 : i32
    %18 = tpu.dynamic_rotate %17 by %c240_i32_9 dim 1 : vector<8x256xf32>, i32 -> vector<8x256xf32>
    %c16_i32_10 = arith.constant 16 : i32
    %19 = tpu.dynamic_rotate %17 by %c16_i32_10 dim 1 : vector<8x256xf32>, i32 -> vector<8x256xf32>
    %20 = arith.select %6, %18, %19 : vector<8x256xi1>, vector<8x256xf32>
    %21 = vector.broadcast %0 : vector<1x256xf32> to vector<8x256xf32>
    %22 = arith.mulf %17, %21 : vector<8x256xf32>
    %23 = vector.broadcast %1 : vector<1x256xf32> to vector<8x256xf32>
    %24 = arith.mulf %20, %23 : vector<8x256xf32>
    %25 = arith.addf %22, %24 : vector<8x256xf32>
    %c0_11 = arith.constant 0 : index
    %c0_12 = arith.constant 0 : index
    %26 = vector.load %arg6[%c0_11, %c0_12] : memref<8x256xf32, #tpu.memory_space<vmem>>, vector<8x256xf32>
    tpu.vector_store %arg6[%c0_11, %c0_12], %25 {strides = array<i32>} : memref<8x256xf32, #tpu.memory_space<vmem>>, vector<8x256xf32>,
    return
  }
  func.func @transform_0(%arg0: i32, %arg1: i32) -> (i32, i32) {
    %c0_i32 = arith.constant 0 : i32
    %c0_i32_0 = arith.constant 0 : i32
    return %c0_i32, %arg0 : i32, i32
  }
  func.func @transform_1(%arg0: i32, %arg1: i32) -> (i32, i32) {
    %c0_i32 = arith.constant 0 : i32
    return %arg1, %arg0 : i32, i32
  }
  func.func @transform_2(%arg0: i32, %arg1: i32) -> (i32, i32) {
    %c0_i32 = arith.constant 0 : i32
    return %arg1, %arg0 : i32, i32
  }
  func.func @transform_3(%arg0: i32, %arg1: i32) -> (i32, i32) {
    %c0_i32 = arith.constant 0 : i32
    return %arg1, %arg0 : i32, i32
  }
  func.func @transform_4(%arg0: i32, %arg1: i32) -> (i32, i32) {
    %c0_i32 = arith.constant 0 : i32
    return %arg1, %arg0 : i32, i32
  }
}

</mosaic_0001>

<llo_original>
// kernel: tpu_custom_call.1
$region0: #{tpu_custom_call.1}
  #allocation0 [shape = 'u32[]', space=smem, size = 0x4, offset = 0x4, fixed_abs, tag = 'smem constant byte address 0x4 - core index']
  #allocation1 [shape = 'u32[144,128]{1,0:T(1,128)}', space=vmem, size = 0x12000, scoped, tag = 'internal scratch']
  %s0 = inlined_call_operand.hbm [shape: f32[3,256], index: 0, kind: input, shape index: {}]
  %s1 = inlined_call_operand.hbm [shape: f32[8,256], index: 1, kind: input, shape index: {}]
  %s2 = inlined_call_operand.hbm [shape: f32[8,256], index: 2, kind: input, shape index: {}]
  %s3 = inlined_call_operand.hbm [shape: f32[8,256], index: 3, kind: output, shape index: {0}]
  %s4 = inlined_call_operand.hbm [shape: f32[8,256], index: 4, kind: output, shape index: {1}]
  %5 = xla_tuple %s3, %s4
  %s6 = sld [smem:[#allocation0]]
  $region42: #{tpu_custom_call.1} parent=0
    _
  %s8 = ssub.s32 1, %s6
  %s9 = scalar_select 0, %s8, %s6
  $region1: #{tpu_custom_call.1} parent=0
    #allocation2 [shape = 'u8[4096]{0}', space=vmem, size = 0x1000, scoped, tag = 'input window, operand 0, single buffered']
    #allocation3 [shape = 's32[1]{0}', space=sflag, size = 0x4, scoped, tag = 'scoped memory for tpu_custom_call.1']
    #allocation4 [shape = 's32[1]{0}', space=sflag, size = 0x4, scoped, tag = 'scoped memory for tpu_custom_call.1']
    #allocation5 [shape = 'u8[8192]{0}', space=vmem, size = 0x2000, scoped, tag = 'input window, operand 1, single buffered']
    #allocation6 [shape = 's32[1]{0}', space=sflag, size = 0x4, scoped, tag = 'scoped memory for tpu_custom_call.1']
    #allocation7 [shape = 'u8[8192]{0}', space=vmem, size = 0x2000, scoped, tag = 'input window, operand 2, single buffered']
    #allocation8 [shape = 'u8[8192]{0}', space=vmem, size = 0x2000, scoped, tag = 'output window, operand 0, single buffered']
    #allocation9 [shape = 'u8[8192]{0}', space=vmem, size = 0x2000, scoped, tag = 'output window, operand 1, single buffered']
    #allocation10 [shape = 's32[1]{0}', space=sflag, size = 0x4, scoped, tag = 'scoped memory for tpu_custom_call.1']
    %10 = vsyncpa [#allocation3], 0
    %11 = vsyncpa [#allocation6], 0
    %12 = vsyncpa [#allocation4], 0
    %13 = vsyncpa [#allocation10], 0
    // Predicated region
    $region2: #{tpu_custom_call.1} parent=1 // pred_check
      _
    $region3: #{tpu_custom_call.1} parent=1 // pred_check_branch
      %15 = sbr.rel (0) target = $region5
    $region4: #{tpu_custom_call.1} parent=1 // pred_region
      %s17 = ssub.s32 128, 128
      %18 = vsyncadd [#allocation3], %s17
      %s20 = sshll.u32 [#allocation2], 4
      %s21 = int_to_ptr.vmem [resolvable:$true] %s20
      %23 = dma.hbm_to_vmem [thread:$0]  %s0, 128, %s21, [#allocation3]
    $region5: #{tpu_custom_call.1} parent=1 // pred_fallthru
      _
    // Predicated region
    $region6: #{tpu_custom_call.1} parent=1 // pred_check
      _
    $region7: #{tpu_custom_call.1} parent=1 // pred_check_branch
      %25 = sbr.rel (0) target = $region9
    $region8: #{tpu_custom_call.1} parent=1 // pred_region
      %s27 = ssub.s32 256, 256
      %28 = vsyncadd [#allocation6], %s27
      %s30 = sshll.u32 [#allocation5], 4
      %s31 = int_to_ptr.vmem [resolvable:$true] %s30
      %33 = dma.hbm_to_vmem [thread:$0]  %s1, 256, %s31, [#allocation6]
    $region9: #{tpu_custom_call.1} parent=1 // pred_fallthru
      _
    // Predicated region
    $region10: #{tpu_custom_call.1} parent=1 // pred_check
      _
    $region11: #{tpu_custom_call.1} parent=1 // pred_check_branch
      %35 = sbr.rel (0) target = $region13
    $region12: #{tpu_custom_call.1} parent=1 // pred_region
      %s37 = ssub.s32 256, 256
      %38 = vsyncadd [#allocation6], %s37
      %s40 = sshll.u32 [#allocation7], 4
      %s41 = int_to_ptr.vmem [resolvable:$true] %s40
      %43 = dma.hbm_to_vmem [thread:$0]  %s2, 256, %s41, [#allocation6]
    $region13: #{tpu_custom_call.1} parent=1 // pred_fallthru
      _
    // Predicated region
    $region14: #{tpu_custom_call.1} parent=1 // pred_check
      _
    $region15: #{tpu_custom_call.1} parent=1 // pred_check_branch
      %45 = sbr.rel (0) target = $region17
    $region16: #{tpu_custom_call.1} parent=1 // pred_region
      %46 = dma.done [#allocation3], 128
    $region17: #{tpu_custom_call.1} parent=1 // pred_fallthru
      _
    // Predicated region
    $region18: #{tpu_custom_call.1} parent=1 // pred_check
      _
    $region19: #{tpu_custom_call.1} parent=1 // pred_check_branch
      %48 = sbr.rel (0) target = $region21
    $region20: #{tpu_custom_call.1} parent=1 // pred_region
      %49 = dma.done [#allocation6], 256
    $region21: #{tpu_custom_call.1} parent=1 // pred_fallthru
      _
    // Predicated region
    $region22: #{tpu_custom_call.1} parent=1 // pred_check
      _
    $region23: #{tpu_custom_call.1} parent=1 // pred_check_branch
      %51 = sbr.rel (0) target = $region25
    $region24: #{tpu_custom_call.1} parent=1 // pred_region
      %52 = dma.done [#allocation6], 256
    $region25: #{tpu_custom_call.1} parent=1 // pred_fallthru
      _
    %v53 = vld [vmem:[#allocation2] ss:$4 sm:$0x3]
    %s54 = scalar_lea.vmem [#allocation2], 1
    %v55 = vld [vmem:[%s54] ss:$4 sm:$0x3]
    %s56 = scalar_lea.vmem [#allocation2], 2
    %v57 = vld [vmem:[%s56] ss:$4 sm:$0x3]
    %v59 = vlaneseq
    %v60 = vshrl.u32 %v59, 7
    %v61 = vsub.s32 0, %v60
    %v62 = vrot.slane %v57, %v61
    %v63 = vlaneseq
    %v64 = vshrl.u32 %v63, 7
    %v65 = vsub.s32 1, %v64
    %v66 = vrot.slane %v57, %v65
    %vm69 = vcmp.ne.f32.partialorder %v62, 0.0
    %vm70 = vcmp.ne.f32.partialorder %v66, 0.0
    %v71 = vld [vmem:[#allocation5] sm:$0xff]
    %v72 = vld [vmem:[#allocation5 + $0x8] sm:$0xff]
    %73 = vrot.lane.b32.xlu0 %v71, 112
    %v74 = vpop.permute.xlu0 %73
    %75 = vrot.lane.b32.xlu0 %v72, 112
    %v76 = vpop.permute.xlu0 %75
    %v77 = vlaneseq
    %v78 = vand.u32 %v77, 127
    %vm79 = vcmp.lt.s32.totalorder %v78, 112
    %v80 = vsel %vm79, %v74, %v76
    %v81 = vsel %vm79, %v76, %v74
    %82 = vrot.lane.b32.xlu0 %v71, 16
    %v83 = vpop.permute.xlu0 %82
    %84 = vrot.lane.b32.xlu0 %v72, 16
    %v85 = vpop.permute.xlu0 %84
    %vm86 = vcmp.lt.s32.totalorder %v78, 16
    %v87 = vsel %vm86, %v83, %v85
    %v88 = vsel %vm86, %v85, %v83
    %v89 = vsel %vm69, %v80, %v88
    %v90 = vsel %vm70, %v81, %v87
    %v92 = vlaneseq
    %v93 = vshrl.u32 %v92, 7
    %v94 = vsub.s32 0, %v93
    %v95 = vrot.slane %v53, %v94
    %v96 = vlaneseq
    %v97 = vshrl.u32 %v96, 7
    %v98 = vsub.s32 1, %v97
    %v99 = vrot.slane %v53, %v98
    %v102 = vmul.f32 %v71, %v95
    %v103 = vmul.f32 %v72, %v99
    %v105 = vlaneseq
    %v106 = vshrl.u32 %v105, 7
    %v107 = vsub.s32 0, %v106
    %v108 = vrot.slane %v55, %v107
    %v109 = vlaneseq
    %v110 = vshrl.u32 %v109, 7
    %v111 = vsub.s32 1, %v110
    %v112 = vrot.slane %v55, %v111
    %v115 = vmul.f32 %v89, %v108
    %v116 = vmul.f32 %v90, %v112
    %v117 = vadd.f32 %v102, %v115
    %v118 = vadd.f32 %v103, %v116
    %119 = vst [vmem:[#allocation8] sm:$0xff] %v117
    %120 = vst [vmem:[#allocation8 + $0x8] sm:$0xff] %v118
    %v121 = vld [vmem:[#allocation7] sm:$0xff]
    %v122 = vld [vmem:[#allocation7 + $0x8] sm:$0xff]
    %123 = vrot.lane.b32.xlu0 %v121, 112
    %v124 = vpop.permute.xlu0 %123
    %125 = vrot.lane.b32.xlu0 %v122, 112
    %v126 = vpop.permute.xlu0 %125
    %v127 = vsel %vm79, %v124, %v126
    %v128 = vsel %vm79, %v126, %v124
    %129 = vrot.lane.b32.xlu0 %v121, 16
    %v130 = vpop.permute.xlu0 %129
    %131 = vrot.lane.b32.xlu0 %v122, 16
    %v132 = vpop.permute.xlu0 %131
    %v133 = vsel %vm86, %v130, %v132
    %v134 = vsel %vm86, %v132, %v130
    %v135 = vsel %vm69, %v127, %v134
    %v136 = vsel %vm70, %v128, %v133
    %v137 = vmul.f32 %v121, %v95
    %v138 = vmul.f32 %v122, %v99
    %v139 = vmul.f32 %v135, %v108
    %v140 = vmul.f32 %v136, %v112
    %v141 = vadd.f32 %v137, %v139
    %v142 = vadd.f32 %v138, %v140
    %143 = vst [vmem:[#allocation9] sm:$0xff] %v141
    %144 = vst [vmem:[#allocation9 + $0x8] sm:$0xff] %v142
    // Predicated region
    $region26: #{tpu_custom_call.1} parent=1 // pred_check
      _
    $region27: #{tpu_custom_call.1} parent=1 // pred_check_branch
      %146 = sbr.rel (0) target = $region29
    $region28: #{tpu_custom_call.1} parent=1 // pred_region
      %s148 = ssub.s32 256, 256
      %149 = vsyncadd [#allocation4], %s148
      %s151 = sshll.u32 [#allocation8], 4
      %s152 = int_to_ptr.vmem [resolvable:$true] %s151
      %154 = dma.vmem_to_hbm [thread:$0]  %s152, 256, %s3, [#allocation4]
    $region29: #{tpu_custom_call.1} parent=1 // pred_fallthru
      _
    // Predicated region
    $region30: #{tpu_custom_call.1} parent=1 // pred_check
      _
    $region31: #{tpu_custom_call.1} parent=1 // pred_check_branch
      %156 = sbr.rel (0) target = $region33
    $region32: #{tpu_custom_call.1} parent=1 // pred_region
      %s158 = ssub.s32 256, 256
      %159 = vsyncadd [#allocation10], %s158
      %s161 = sshll.u32 [#allocation9], 4
      %s162 = int_to_ptr.vmem [resolvable:$true] %s161
      %164 = dma.vmem_to_hbm [thread:$0]  %s162, 256, %s4, [#allocation10]
    $region33: #{tpu_custom_call.1} parent=1 // pred_fallthru
      _
    // Predicated region
    $region34: #{tpu_custom_call.1} parent=1 // pred_check
      _
    $region35: #{tpu_custom_call.1} parent=1 // pred_check_branch
      %166 = sbr.rel (0) target = $region37
    $region36: #{tpu_custom_call.1} parent=1 // pred_region
      %167 = dma.done [#allocation4], 256
    $region37: #{tpu_custom_call.1} parent=1 // pred_fallthru
      _
    // Predicated region
    $region38: #{tpu_custom_call.1} parent=1 // pred_check
      _
    $region39: #{tpu_custom_call.1} parent=1 // pred_check_branch
      %169 = sbr.rel (0) target = $region41
    $region40: #{tpu_custom_call.1} parent=1 // pred_region
      %170 = dma.done [#allocation10], 256
    $region41: #{tpu_custom_call.1} parent=1 // pred_fallthru
      _
    %171 = vsyncpa [#allocation3], 1
    %172 = vsyncpa [#allocation6], 1
    %173 = vsyncpa [#allocation4], 1
    %174 = vsyncpa [#allocation10], 1

</llo_original>
